<compile_context>
chip_gen: v6e
topology: v6e:2x2x1
jax: 0.10.0
libtpu: 0.0.40
codegen_flags: <defaults>
</compile_context>

<pallas_src>
import functools

import jax
import jax.numpy as jnp
from jax.experimental import pallas as pl
from jax.experimental.pallas import tpu as pltpu


def _round_up(x, m):
    return ((x + m - 1) // m) * m


def _finalize_tile(acc_ref, fused_ref, w_ref, b_ref, out_ref, *, deg_col, fin_pad):
    """Shared epilogue: mean-normalize, stage h_neigh, fused matmul, bias, ReLU."""
    acc = acc_ref[...]                                   # (tm, fin_pad) f32
    deg = acc[:, deg_col:deg_col + 1]                    # in-degree (integer-valued)
    h_neigh = acc / jnp.maximum(deg, 1.0)                # exact mean; once per row tile
    fused_ref[:, fin_pad:] = h_neigh.astype(fused_ref.dtype)
    h = jnp.dot(fused_ref[...], w_ref[...],
                preferred_element_type=jnp.float32) + b_ref[...]
    out_ref[...] = jnp.maximum(h, 0.0).astype(out_ref.dtype)


def _sage_kernel_resident(adj_ref, x_ref, w_ref, b_ref, out_ref,
                          acc_ref, fused_ref, *, deg_col, fin_pad, tm, tk):
    """x is fully VMEM-resident; self/neighbor rows are sliced from it."""
    i = pl.program_id(0)
    k = pl.program_id(1)

    @pl.when(k == 0)
    def _init():
        acc_ref[...] = jnp.zeros_like(acc_ref)
        # Stage the "self" rows into the left half of the fused operand once per
        # row tile (hidden under later adjacency-tile DMAs).
        fused_ref[:, :fin_pad] = x_ref[pl.ds(pl.multiple_of(i * tm, tm), tm), :]

    x_nb = x_ref[pl.ds(pl.multiple_of(k * tk, tk), tk), :]
    adj = adj_ref[...].astype(x_nb.dtype)                # int8 -> bf16 on the VPU
    acc_ref[...] += jnp.dot(adj, x_nb, preferred_element_type=jnp.float32)

    @pl.when(k == pl.num_programs(1) - 1)
    def _fin():
        _finalize_tile(acc_ref, fused_ref, w_ref, b_ref, out_ref,
                       deg_col=deg_col, fin_pad=fin_pad)


def _sage_kernel_streamed(adj_ref, x_nb_ref, x_self_ref, w_ref, b_ref, out_ref,
                          acc_ref, fused_ref, *, deg_col, fin_pad):
    """Large-graph fallback: neighbor rows streamed per K tile, self rows per row tile."""
    k = pl.program_id(1)

    @pl.when(k == 0)
    def _init():
        acc_ref[...] = jnp.zeros_like(acc_ref)
        fused_ref[:, :fin_pad] = x_self_ref[...]

    adj = adj_ref[...].astype(x_nb_ref.dtype)            # int8 -> bf16 on the VPU
    acc_ref[...] += jnp.dot(adj, x_nb_ref[...], preferred_element_type=jnp.float32)

    @pl.when(k == pl.num_programs(1) - 1)
    def _fin():
        _finalize_tile(acc_ref, fused_ref, w_ref, b_ref, out_ref,
                       deg_col=deg_col, fin_pad=fin_pad)


def graphsage_one(adj, x, w_self, w_neigh, bias, *, tm=None, tk=None,
                  out_dtype=jnp.bfloat16):
    """adj: [N, N] binary (adj[i, j] = 1 iff edge j->i), x: [N, Fin],
    w_self / w_neigh: [Fin, Fout], bias: [1, Fout]."""
    n, fin = x.shape
    fout = w_self.shape[1]
    bf16 = jnp.bfloat16

    # Hardware query (VMEM differs: 128 MiB on v5e/v6e, 64 MiB per TC on v7x).
    try:
        vmem_cap = int(pltpu.get_tpu_info().vmem_capacity_bytes)
    except Exception:
        vmem_cap = 64 * 1024 * 1024  # conservative (v7x-sized) fallback

    # Lane-dense padding; +1 lane inside the padding for the degree (ones) column.
    fin_pad = _round_up(fin + 1, 128)
    fout_pad = _round_up(fout, 128)
    n128 = _round_up(n, 128)

    # Tile defaults per review: 512 x 2048 int8 adjacency tiles (1 MiB); go to a
    # 4096-wide K tile on 64-MiB-VMEM parts (v7x) whose faster HBM makes the
    # fixed per-step overhead relatively larger.  Clamp for small graphs.
    if tm is None:
        tm = 512
    if tk is None:
        tk = 4096 if vmem_cap <= 64 * 1024 * 1024 else 2048
    tm = min(tm, n128)
    tk = min(tk, n128)
    # Keep >= 2 row tiles when possible so the "parallel" axis actually feeds
    # both TensorCores on megacore parts (never shrink below 256 rows).
    if n128 // tm < 2 and n128 >= 512:
        tm = max(256, (n128 // 2) // 128 * 128)

    n_rows_pad = _round_up(n, tm)
    n_cols_pad = _round_up(n, tk)
    n_x_pad = max(n_rows_pad, n_cols_pad)

    # ---- operand packing (no f32 (N_pad, N_pad) temporary) -------------------
    adj_p = jnp.pad(adj.astype(jnp.int8),
                    ((0, n_rows_pad - n), (0, n_cols_pad - n)))

    x_p = jnp.pad(x.astype(bf16), ((0, n_x_pad - n), (0, fin_pad - fin)))
    x_p = x_p.at[:n, fin].set(1.0)       # ones column -> in-degree via A@X

    # Stacked weights: rows [0, fin) multiply x_self, rows [fin_pad, fin_pad+fin)
    # multiply h_neigh; all padding rows (incl. the degree lane) are zero.
    w_cat = jnp.zeros((2 * fin_pad, fout_pad), jnp.float32)
    w_cat = w_cat.at[:fin, :fout].set(w_self)
    w_cat = w_cat.at[fin_pad:fin_pad + fin, :fout].set(w_neigh)
    w_cat = w_cat.astype(bf16)

    b_p = jnp.zeros((1, fout_pad), jnp.float32).at[:, :fout].set(bias)

    grid = (n_rows_pad // tm, n_cols_pad // tk)

    # ---- VMEM budget: keep x resident if it fits (count it twice in case the
    # pipeline double-buffers the constant-index block). ----------------------
    x_bytes = n_x_pad * fin_pad * 2
    fixed_bytes = (2 * tm * tk * 1                        # int8 adjacency, double-buffered
                   + 2 * 2 * fin_pad * fout_pad * 2       # stacked weights (bf16)
                   + tm * fin_pad * 4                     # f32 accumulator scratch
                   + tm * 2 * fin_pad * 2                 # bf16 fused staging scratch
                   + 2 * tm * fout_pad * jnp.dtype(out_dtype).itemsize)
    x_resident = (2 * x_bytes + fixed_bytes) <= int(vmem_cap * 0.8)

    # 112 MiB on v5e/v6e (128 MiB physical), ~56 MiB on v7x; never below 32 MiB
    # (v5e's scoped default of 16 MiB would reject the enlarged tiles).
    vmem_limit = max(32 * 1024 * 1024,
                     min(vmem_cap * 7 // 8, 112 * 1024 * 1024))

    scratch = [pltpu.VMEM((tm, fin_pad), jnp.float32),
               pltpu.VMEM((tm, 2 * fin_pad), bf16)]
    cparams = pltpu.CompilerParams(
        dimension_semantics=("parallel", "arbitrary"),
        vmem_limit_bytes=int(vmem_limit))

    if x_resident:
        out_p = pl.pallas_call(
            functools.partial(_sage_kernel_resident, deg_col=fin,
                              fin_pad=fin_pad, tm=tm, tk=tk),
            out_shape=jax.ShapeDtypeStruct((n_rows_pad, fout_pad), out_dtype),
            grid=grid,
            in_specs=[
                pl.BlockSpec((tm, tk), lambda i, k: (i, k)),                 # adj int8 tile
                pl.BlockSpec((n_x_pad, fin_pad), lambda i, k: (0, 0)),       # resident x
                pl.BlockSpec((2 * fin_pad, fout_pad), lambda i, k: (0, 0)),  # stacked W
                pl.BlockSpec((1, fout_pad), lambda i, k: (0, 0)),            # bias
            ],
            out_specs=pl.BlockSpec((tm, fout_pad), lambda i, k: (i, 0)),
            scratch_shapes=scratch,
            compiler_params=cparams,
        )(adj_p, x_p, w_cat, b_p)
    else:
        # Streamed fallback for graphs whose features don't fit VMEM.
        x_nb_p = x_p[:n_cols_pad]
        x_self_p = x_p[:n_rows_pad]
        out_p = pl.pallas_call(
            functools.partial(_sage_kernel_streamed, deg_col=fin, fin_pad=fin_pad),
            out_shape=jax.ShapeDtypeStruct((n_rows_pad, fout_pad), out_dtype),
            grid=grid,
            in_specs=[
                pl.BlockSpec((tm, tk), lambda i, k: (i, k)),                 # adj int8 tile
                pl.BlockSpec((tk, fin_pad), lambda i, k: (k, 0)),            # neighbor rows
                pl.BlockSpec((tm, fin_pad), lambda i, k: (i, 0)),            # self rows
                pl.BlockSpec((2 * fin_pad, fout_pad), lambda i, k: (0, 0)),  # stacked W
                pl.BlockSpec((1, fout_pad), lambda i, k: (0, 0)),            # bias
            ],
            out_specs=pl.BlockSpec((tm, fout_pad), lambda i, k: (i, 0)),
            scratch_shapes=scratch,
            compiler_params=cparams,
        )(adj_p, x_nb_p, x_self_p, w_cat, b_p)

    return out_p[:n, :fout]


def _reference(adj, x, w_self, w_neigh, bias):
    deg = jnp.maximum(adj.sum(-1, keepdims=True), 1.0)
    h_neigh = (adj @ x) / deg
    return jnp.maximum(x @ w_self + h_neigh @ w_neigh + bias, 0.0)


if __name__ == "__main__":
    N, IN_FEATS, H_FEATS1 = 16, 32, 32

    key = jax.random.PRNGKey(0)
    k_adj, k_x, k_ws, k_wn, k_b = jax.random.split(key, 5)

    # Deterministic random binary graph (edge j->i), self-loops removed.
    adj = jax.random.bernoulli(k_adj, p=0.3, shape=(N, N)).astype(jnp.float32)
    adj = adj * (1.0 - jnp.eye(N, dtype=jnp.float32))

    x = jax.random.normal(k_x, (N, IN_FEATS), dtype=jnp.float32)

    # Parameter shapes follow SAGEConv(in_feats, h_feats1, 'mean'), stored [in, out].
    w_self = jax.random.normal(k_ws, (IN_FEATS, H_FEATS1), dtype=jnp.float32) * 0.1
    w_neigh = jax.random.normal(k_wn, (IN_FEATS, H_FEATS1), dtype=jnp.float32) * 0.1
    bias = jax.random.normal(k_b, (1, H_FEATS1), dtype=jnp.float32) * 0.1

    out = graphsage_one(adj, x, w_self, w_neigh, bias)
    out = jax.block_until_ready(out)
    assert out.shape == (N, H_FEATS1)
    out_f32 = out.astype(jnp.float32)

    # Precision-matched reference: same bf16 operand rounding the kernel uses,
    # f32 math otherwise (residual error: bf16 output rounding + accum order).
    q = lambda a: a.astype(jnp.bfloat16).astype(jnp.float32)
    ref_q = _reference(q(adj), q(x), q(w_self), q(w_neigh), bias)
    assert jnp.allclose(out_f32, ref_q, atol=2e-2, rtol=2e-2), \
        float(jnp.max(jnp.abs(out_f32 - ref_q)))

    # Looser sanity check against the pure-f32 reference.
    ref = _reference(adj, x, w_self, w_neigh, bias)
    assert jnp.allclose(out_f32, ref, atol=5e-2, rtol=5e-2), \
        float(jnp.max(jnp.abs(out_f32 - ref)))

    print("KERNEL_OK")
</pallas_src>

<mosaic_0001>
module attributes {stable_mosaic.version = 11 : i64} {
  func.func @_sage_kernel_resident(%arg0: i32, %arg1: i32, %arg2: memref<128x128xi8, #tpu.memory_space<vmem>>, %arg3: memref<128x128xbf16, #tpu.memory_space<vmem>>, %arg4: memref<256x128xbf16, #tpu.memory_space<vmem>>, %arg5: memref<1x128xf32, #tpu.memory_space<vmem>>, %arg6: memref<128x128xbf16, #tpu.memory_space<vmem>>, %arg7: memref<128x128xf32, #tpu.memory_space<vmem>>, %arg8: memref<128x256xbf16, #tpu.memory_space<vmem>>) attributes {dimension_semantics = [#tpu.dimension_semantics<parallel>, #tpu.dimension_semantics<arbitrary>], iteration_bounds = array<i64: 1, 1>, scalar_prefetch = 0 : i64, scratch_operands = 2 : i64, tpu.core_type = #tpu.core_type<tc>, window_params = [{transform_indices = @transform_0, window_bounds = array<i64: 128, 128>}, {pipeline_mode = #tpu.pipeline_mode<synchronous>, transform_indices = @transform_1, window_bounds = array<i64: 128, 128>}, {pipeline_mode = #tpu.pipeline_mode<synchronous>, transform_indices = @transform_2, window_bounds = array<i64: 256, 128>}, {pipeline_mode = #tpu.pipeline_mode<synchronous>, transform_indices = @transform_3, window_bounds = array<i64: 1, 128>}, {transform_indices = @transform_4, window_bounds = array<i64: 128, 128>}]} {
    %c0_i32 = arith.constant 0 : i32
    %0 = arith.cmpi eq, %arg1, %c0_i32 : i32
    %1 = arith.extui %0 : i1 to i32
    %c0_i32_0 = arith.constant 0 : i32
    %2 = arith.cmpi ne, %1, %c0_i32_0 : i32
    scf.if %2 {
      %cst_9 = arith.constant 0.000000e+00 : f32
      %16 = vector.broadcast %cst_9 : f32 to vector<128x128xf32>
      %c0_10 = arith.constant 0 : index
      %c0_11 = arith.constant 0 : index
      %17 = vector.load %arg7[%c0_10, %c0_11] : memref<128x128xf32, #tpu.memory_space<vmem>>, vector<128x128xf32>
      tpu.vector_store %arg7[%c0_10, %c0_11], %16 {strides = array<i32>} : memref<128x128xf32, #tpu.memory_space<vmem>>, vector<128x128xf32>,
      %c128_i32_12 = arith.constant 128 : i32
      %18 = arith.muli %arg0, %c128_i32_12 : i32
      %19 = tpu.assume_multiple %18, 128 : i32
      %20 = arith.index_cast %19 : i32 to index
      %c0_13 = arith.constant 0 : index
      %21 = vector.load %arg3[%20, %c0_13] : memref<128x128xbf16, #tpu.memory_space<vmem>>, vector<128x128xbf16>
      %c0_14 = arith.constant 0 : index
      %c0_15 = arith.constant 0 : index
      %22 = vector.load %arg8[%c0_14, %c0_15] : memref<128x256xbf16, #tpu.memory_space<vmem>>, vector<128x128xbf16>
      tpu.vector_store %arg8[%c0_14, %c0_15], %21 {strides = array<i32>} : memref<128x256xbf16, #tpu.memory_space<vmem>>, vector<128x128xbf16>,
    } else {
    }
    %c128_i32 = arith.constant 128 : i32
    %3 = arith.muli %arg1, %c128_i32 : i32
    %4 = tpu.assume_multiple %3, 128 : i32
    %5 = arith.index_cast %4 : i32 to index
    %c0 = arith.constant 0 : index
    %6 = vector.load %arg3[%5, %c0] : memref<128x128xbf16, #tpu.memory_space<vmem>>, vector<128x128xbf16>
    %c0_1 = arith.constant 0 : index
    %c0_2 = arith.constant 0 : index
    %7 = vector.load %arg2[%c0_1, %c0_2] : memref<128x128xi8, #tpu.memory_space<vmem>>, vector<128x128xi8>
    %8 = arith.sitofp %7 : vector<128x128xi8> to vector<128x128xbf16>
    %c0_3 = arith.constant 0 : index
    %c0_4 = arith.constant 0 : index
    %9 = vector.load %arg7[%c0_3, %c0_4] : memref<128x128xf32, #tpu.memory_space<vmem>>, vector<128x128xf32>
    %cst = arith.constant dense<0.000000e+00> : vector<128x128xf32>
    %10 = tpu.matmul %8, %6, %cst {dimension_numbers = #tpu.dot_dimension_numbers<[1], [0], [0], [1], [0, 0, 1, 1], [], []>} : vector<128x128xbf16>, vector<128x128xbf16>, vector<128x128xf32> -> vector<128x128xf32>
    %11 = arith.addf %9, %10 : vector<128x128xf32>
    %c0_5 = arith.constant 0 : index
    %c0_6 = arith.constant 0 : index
    %12 = vector.load %arg7[%c0_5, %c0_6] : memref<128x128xf32, #tpu.memory_space<vmem>>, vector<128x128xf32>
    tpu.vector_store %arg7[%c0_5, %c0_6], %11 {strides = array<i32>} : memref<128x128xf32, #tpu.memory_space<vmem>>, vector<128x128xf32>,
    %c0_i32_7 = arith.constant 0 : i32
    %13 = arith.cmpi eq, %arg1, %c0_i32_7 : i32
    %14 = arith.extui %13 : i1 to i32
    %c0_i32_8 = arith.constant 0 : i32
    %15 = arith.cmpi ne, %14, %c0_i32_8 : i32
    scf.if %15 {
      %c0_9 = arith.constant 0 : index
      %c0_10 = arith.constant 0 : index
      %16 = vector.load %arg7[%c0_9, %c0_10] : memref<128x128xf32, #tpu.memory_space<vmem>>, vector<128x128xf32>
      %17 = vector.extract_strided_slice %16 {offsets = [0, 32], sizes = [128, 1], strides = [1, 1]} : vector<128x128xf32> to vector<128x1xf32>
      %cst_11 = arith.constant 1.000000e+00 : f32
      %18 = vector.broadcast %cst_11 : f32 to vector<128x1xf32>
      %19 = arith.maximumf %17, %18 : vector<128x1xf32>
      %20 = vector.broadcast %19 : vector<128x1xf32> to vector<128x128xf32>
      %21 = arith.divf %16, %20 : vector<128x128xf32>
      %22 = arith.truncf %21 : vector<128x128xf32> to vector<128x128xbf16>
      %c0_12 = arith.constant 0 : index
      %c128 = arith.constant 128 : index
      %23 = vector.load %arg8[%c0_12, %c128] : memref<128x256xbf16, #tpu.memory_space<vmem>>, vector<128x128xbf16>
      tpu.vector_store %arg8[%c0_12, %c128], %22 {strides = array<i32>} : memref<128x256xbf16, #tpu.memory_space<vmem>>, vector<128x128xbf16>,
      %c0_13 = arith.constant 0 : index
      %c0_14 = arith.constant 0 : index
      %24 = vector.load %arg8[%c0_13, %c0_14] : memref<128x256xbf16, #tpu.memory_space<vmem>>, vector<128x256xbf16>
      %c0_15 = arith.constant 0 : index
      %c0_16 = arith.constant 0 : index
      %25 = vector.load %arg4[%c0_15, %c0_16] : memref<256x128xbf16, #tpu.memory_space<vmem>>, vector<256x128xbf16>
      %cst_17 = arith.constant dense<0.000000e+00> : vector<128x128xf32>
      %26 = tpu.matmul %24, %25, %cst_17 {dimension_numbers = #tpu.dot_dimension_numbers<[1], [0], [0], [1], [0, 0, 1, 1], [], []>} : vector<128x256xbf16>, vector<256x128xbf16>, vector<128x128xf32> -> vector<128x128xf32>
      %c0_18 = arith.constant 0 : index
      %c0_19 = arith.constant 0 : index
      %27 = vector.load %arg5[%c0_18, %c0_19] : memref<1x128xf32, #tpu.memory_space<vmem>>, vector<1x128xf32>
      %28 = vector.broadcast %27 : vector<1x128xf32> to vector<128x128xf32>
      %29 = arith.addf %26, %28 : vector<128x128xf32>
      %cst_20 = arith.constant 0.000000e+00 : f32
      %30 = vector.broadcast %cst_20 : f32 to vector<128x128xf32>
      %31 = arith.maximumf %29, %30 : vector<128x128xf32>
      %32 = arith.truncf %31 : vector<128x128xf32> to vector<128x128xbf16>
      %c0_21 = arith.constant 0 : index
      %c0_22 = arith.constant 0 : index
      %33 = vector.load %arg6[%c0_21, %c0_22] : memref<128x128xbf16, #tpu.memory_space<vmem>>, vector<128x128xbf16>
      tpu.vector_store %arg6[%c0_21, %c0_22], %32 {strides = array<i32>} : memref<128x128xbf16, #tpu.memory_space<vmem>>, vector<128x128xbf16>,
    } else {
    }
    return
  }
  func.func @transform_0(%arg0: i32, %arg1: i32) -> (i32, i32) {
    %c0_i32 = arith.constant 0 : i32
    return %arg0, %arg1 : i32, i32
  }
  func.func @transform_1(%arg0: i32, %arg1: i32) -> (i32, i32) {
    %c0_i32 = arith.constant 0 : i32
    %c0_i32_0 = arith.constant 0 : i32
    %c0_i32_1 = arith.constant 0 : i32
    return %c0_i32, %c0_i32_0 : i32, i32
  }
  func.func @transform_2(%arg0: i32, %arg1: i32) -> (i32, i32) {
    %c0_i32 = arith.constant 0 : i32
    %c0_i32_0 = arith.constant 0 : i32
    %c0_i32_1 = arith.constant 0 : i32
    return %c0_i32, %c0_i32_0 : i32, i32
  }
  func.func @transform_3(%arg0: i32, %arg1: i32) -> (i32, i32) {
    %c0_i32 = arith.constant 0 : i32
    %c0_i32_0 = arith.constant 0 : i32
    %c0_i32_1 = arith.constant 0 : i32
    return %c0_i32, %c0_i32_0 : i32, i32
  }
  func.func @transform_4(%arg0: i32, %arg1: i32) -> (i32, i32) {
    %c0_i32 = arith.constant 0 : i32
    %c0_i32_0 = arith.constant 0 : i32
    return %arg0, %c0_i32 : i32, i32
  }
}

</mosaic_0001>

<llo_original>
// kernel: tpu_custom_call.1
$region0: #{tpu_custom_call.1}
  #allocation0 [shape = 'u32[]', space=smem, size = 0x4, offset = 0x4, fixed_abs, tag = 'smem constant byte address 0x4 - core index']
  #allocation1 [shape = 'u32[144,128]{1,0:T(1,128)}', space=vmem, size = 0x12000, scoped, tag = 'internal scratch']
  #allocation2 [shape = 'f32[128,128]{1,0:T(8,128)}', space=vmem, size = 0x10000, scoped, tag = 'scratch operand']
  #allocation3 [shape = 'bf16[128,256]{1,0:T(8,128)(2,1)}', space=vmem, size = 0x10000, scoped, tag = 'scratch operand']
  %s0 = inlined_call_operand.hbm [shape: s8[128,128], index: 0, kind: input, shape index: {}]
  %s1 = inlined_call_operand.hbm [shape: bf16[128,128], index: 1, kind: input, shape index: {}]
  %s2 = inlined_call_operand.hbm [shape: bf16[256,128], index: 2, kind: input, shape index: {}]
  %s3 = inlined_call_operand.vmem [shape: f32[1,128], index: 3, kind: input, shape index: {}]
  %s4 = inlined_call_operand.hbm [shape: bf16[128,128], index: 4, kind: output, shape index: {}]
  %s5 = sld [smem:[#allocation0]]
  $region46: #{tpu_custom_call.1} parent=0
    _
  %s7 = ssub.s32 1, %s5
  %s8 = scalar_select 0, %s7, %s5
  $region1: #{tpu_custom_call.1} parent=0
    #allocation4 [shape = 'u8[16384]{0}', space=vmem, size = 0x4000, scoped, tag = 'input window, operand 0, single buffered']
    #allocation5 [shape = 's32[1]{0}', space=sflag, size = 0x4, scoped, tag = 'scoped memory for tpu_custom_call.1']
    #allocation6 [shape = 's32[1]{0}', space=sflag, size = 0x4, scoped, tag = 'scoped memory for tpu_custom_call.1']
    #allocation7 [shape = 'u8[32768]{0}', space=vmem, size = 0x8000, scoped, tag = 'input window, operand 1, single buffered']
    #allocation8 [shape = 's32[1]{0}', space=sflag, size = 0x4, scoped, tag = 'scoped memory for tpu_custom_call.1']
    #allocation9 [shape = 'u8[65536]{0}', space=vmem, size = 0x10000, scoped, tag = 'input window, operand 2, single buffered']
    #allocation10 [shape = 'u8[32768]{0}', space=vmem, size = 0x8000, scoped, tag = 'output window, operand 0, single buffered']
    %9 = vsyncpa [#allocation5], 0
    %10 = vsyncpa [#allocation8], 0
    %11 = vsyncpa [#allocation6], 0
    // Predicated region
    $region2: #{tpu_custom_call.1} parent=1 // pred_check
      _
    $region3: #{tpu_custom_call.1} parent=1 // pred_check_branch
      %13 = sbr.rel (0) target = $region5
    $region4: #{tpu_custom_call.1} parent=1 // pred_region
      %s15 = ssub.s32 512, 512
      %16 = vsyncadd [#allocation5], %s15
      %s17 = sshll.u32 [#allocation4], 4
      %s18 = int_to_ptr.vmem [resolvable:$true] %s17
      %23 = dma.hbm_to_vmem [thread:$0]  %s0, 512, %s18, [#allocation5], 128, 128, 8
    $region5: #{tpu_custom_call.1} parent=1 // pred_fallthru
      _
    // Predicated region
    $region6: #{tpu_custom_call.1} parent=1 // pred_check
      _
    $region7: #{tpu_custom_call.1} parent=1 // pred_check_branch
      %25 = sbr.rel (0) target = $region9
    $region8: #{tpu_custom_call.1} parent=1 // pred_region
      %s27 = ssub.s32 1024, 1024
      %28 = vsyncadd [#allocation8], %s27
      %s29 = sshll.u32 [#allocation7], 4
      %s30 = int_to_ptr.vmem [resolvable:$true] %s29
      %35 = dma.hbm_to_vmem [thread:$0]  %s1, 1024, %s30, [#allocation8], 64, 64, 4
    $region9: #{tpu_custom_call.1} parent=1 // pred_fallthru
      _
    // Predicated region
    $region10: #{tpu_custom_call.1} parent=1 // pred_check
      _
    $region11: #{tpu_custom_call.1} parent=1 // pred_check_branch
      %37 = sbr.rel (0) target = $region13
    $region12: #{tpu_custom_call.1} parent=1 // pred_region
      %s39 = ssub.s32 2048, 2048
      %40 = vsyncadd [#allocation8], %s39
      %s41 = sshll.u32 [#allocation9], 4
      %s42 = int_to_ptr.vmem [resolvable:$true] %s41
      %47 = dma.hbm_to_vmem [thread:$0]  %s2, 2048, %s42, [#allocation8], 64, 64, 4
    $region13: #{tpu_custom_call.1} parent=1 // pred_fallthru
      _
    // Predicated region
    $region14: #{tpu_custom_call.1} parent=1 // pred_check
      _
    $region15: #{tpu_custom_call.1} parent=1 // pred_check_branch
      %49 = sbr.rel (0) target = $region17
    $region16: #{tpu_custom_call.1} parent=1 // pred_region
      _
    $region17: #{tpu_custom_call.1} parent=1 // pred_fallthru
      _
    // Predicated region
    $region18: #{tpu_custom_call.1} parent=1 // pred_check
      _
    $region19: #{tpu_custom_call.1} parent=1 // pred_check_branch
      %51 = sbr.rel (0) target = $region21
    $region20: #{tpu_custom_call.1} parent=1 // pred_region
      %52 = dma.done [#allocation5], 512
    $region21: #{tpu_custom_call.1} parent=1 // pred_fallthru
      _
    // Predicated region
    $region22: #{tpu_custom_call.1} parent=1 // pred_check
      _
    $region23: #{tpu_custom_call.1} parent=1 // pred_check_branch
      %54 = sbr.rel (0) target = $region25
    $region24: #{tpu_custom_call.1} parent=1 // pred_region
      %55 = dma.done [#allocation8], 1024
    $region25: #{tpu_custom_call.1} parent=1 // pred_fallthru
      _
    // Predicated region
    $region26: #{tpu_custom_call.1} parent=1 // pred_check
      _
    $region27: #{tpu_custom_call.1} parent=1 // pred_check_branch
      %57 = sbr.rel (0) target = $region29
    $region28: #{tpu_custom_call.1} parent=1 // pred_region
      %58 = dma.done [#allocation8], 2048
    $region29: #{tpu_custom_call.1} parent=1 // pred_fallthru
      _
    %p60 = scmp.eq.s32.totalorder 0, 0
    // Predicated region
    $region30: #{tpu_custom_call.1} parent=1 // pred_check
      %p61 = pneg %p60
    $region31: #{tpu_custom_call.1} parent=1 // pred_check_branch
      %63 = sbr.rel (%p61) target = $region33
    $region32: #{tpu_custom_call.1} parent=1 // pred_region
      %64 = vst [vmem:[#allocation2] sm:$0xff] 0.0
      %65 = vst [vmem:[#allocation2 + $0x8] sm:$0xff] 0.0
      %66 = vst [vmem:[#allocation2 + $0x10] sm:$0xff] 0.0
      %67 = vst [vmem:[#allocation2 + $0x18] sm:$0xff] 0.0
      %68 = vst [vmem:[#allocation2 + $0x20] sm:$0xff] 0.0
      %69 = vst [vmem:[#allocation2 + $0x28] sm:$0xff] 0.0
      %70 = vst [vmem:[#allocation2 + $0x30] sm:$0xff] 0.0
      %71 = vst [vmem:[#allocation2 + $0x38] sm:$0xff] 0.0
      %72 = vst [vmem:[#allocation2 + $0x40] sm:$0xff] 0.0
      %73 = vst [vmem:[#allocation2 + $0x48] sm:$0xff] 0.0
      %74 = vst [vmem:[#allocation2 + $0x50] sm:$0xff] 0.0
      %75 = vst [vmem:[#allocation2 + $0x58] sm:$0xff] 0.0
      %76 = vst [vmem:[#allocation2 + $0x60] sm:$0xff] 0.0
      %77 = vst [vmem:[#allocation2 + $0x68] sm:$0xff] 0.0
      %78 = vst [vmem:[#allocation2 + $0x70] sm:$0xff] 0.0
      %79 = vst [vmem:[#allocation2 + $0x78] sm:$0xff] 0.0
      %s80 = smul.u32 0, 128
      %s81 = sshra.s32 %s80, 3
      %s82 = sand.u32 %s80, 7
      %s83 = smul.addr %s81, 4
      %s84 = scalar_lea.vmem [#allocation7], %s83
      %v85 = vld [vmem:[%s84] sm:$0xf]
      %v86 = vld [vmem:[%s84 + $0x4] sm:$0xf]
      %v87 = vld [vmem:[%s84 + $0x8] sm:$0xf]
      %v88 = vld [vmem:[%s84 + $0xc] sm:$0xf]
      %v89 = vld [vmem:[%s84 + $0x10] sm:$0xf]
      %v90 = vld [vmem:[%s84 + $0x14] sm:$0xf]
      %v91 = vld [vmem:[%s84 + $0x18] sm:$0xf]
      %v92 = vld [vmem:[%s84 + $0x1c] sm:$0xf]
      %v93 = vld [vmem:[%s84 + $0x20] sm:$0xf]
      %v94 = vld [vmem:[%s84 + $0x24] sm:$0xf]
      %v95 = vld [vmem:[%s84 + $0x28] sm:$0xf]
      %v96 = vld [vmem:[%s84 + $0x2c] sm:$0xf]
      %v97 = vld [vmem:[%s84 + $0x30] sm:$0xf]
      %v98 = vld [vmem:[%s84 + $0x34] sm:$0xf]
      %v99 = vld [vmem:[%s84 + $0x38] sm:$0xf]
      %v100 = vld [vmem:[%s84 + $0x3c] sm:$0xf]
      %101 = vst [vmem:[#allocation3] sm:$0xf] %v85
      %102 = vst [vmem:[#allocation3 + $0x8] sm:$0xf] %v86
      %103 = vst [vmem:[#allocation3 + $0x10] sm:$0xf] %v87
      %104 = vst [vmem:[#allocation3 + $0x18] sm:$0xf] %v88
      %105 = vst [vmem:[#allocation3 + $0x20] sm:$0xf] %v89
      %106 = vst [vmem:[#allocation3 + $0x28] sm:$0xf] %v90
      %107 = vst [vmem:[#allocation3 + $0x30] sm:$0xf] %v91
      %108 = vst [vmem:[#allocation3 + $0x38] sm:$0xf] %v92
      %109 = vst [vmem:[#allocation3 + $0x40] sm:$0xf] %v93
      %110 = vst [vmem:[#allocation3 + $0x48] sm:$0xf] %v94
      %111 = vst [vmem:[#allocation3 + $0x50] sm:$0xf] %v95
      %112 = vst [vmem:[#allocation3 + $0x58] sm:$0xf] %v96
      %113 = vst [vmem:[#allocation3 + $0x60] sm:$0xf] %v97
      %114 = vst [vmem:[#allocation3 + $0x68] sm:$0xf] %v98
      %115 = vst [vmem:[#allocation3 + $0x70] sm:$0xf] %v99
      %116 = vst [vmem:[#allocation3 + $0x78] sm:$0xf] %v100
    $region33: #{tpu_custom_call.1} parent=1 // pred_fallthru
      _
    %s117 = smul.u32 0, 128
    %s118 = sshra.s32 %s117, 3
    %s119 = sand.u32 %s117, 7
    %s120 = smul.addr %s118, 4
    %s121 = scalar_lea.vmem [#allocation7], %s120
    %v122 = vld [vmem:[%s121] sm:$0xf]
    %v123 = vld [vmem:[%s121 + $0x4] sm:$0xf]
    %v124 = vld [vmem:[%s121 + $0x8] sm:$0xf]
    %v125 = vld [vmem:[%s121 + $0xc] sm:$0xf]
    %v126 = vld [vmem:[%s121 + $0x10] sm:$0xf]
    %v127 = vld [vmem:[%s121 + $0x14] sm:$0xf]
    %v128 = vld [vmem:[%s121 + $0x18] sm:$0xf]
    %v129 = vld [vmem:[%s121 + $0x1c] sm:$0xf]
    %v130 = vld [vmem:[%s121 + $0x20] sm:$0xf]
    %v131 = vld [vmem:[%s121 + $0x24] sm:$0xf]
    %v132 = vld [vmem:[%s121 + $0x28] sm:$0xf]
    %v133 = vld [vmem:[%s121 + $0x2c] sm:$0xf]
    %v134 = vld [vmem:[%s121 + $0x30] sm:$0xf]
    %v135 = vld [vmem:[%s121 + $0x34] sm:$0xf]
    %v136 = vld [vmem:[%s121 + $0x38] sm:$0xf]
    %v137 = vld [vmem:[%s121 + $0x3c] sm:$0xf]
    %v138 = vld [vmem:[#allocation4] sm:$0xff]
    %v139 = vld [vmem:[#allocation4 + $0x8] sm:$0xff]
    %v140 = vld [vmem:[#allocation4 + $0x10] sm:$0xff]
    %v141 = vld [vmem:[#allocation4 + $0x18] sm:$0xff]
    %v142 = vunpack.c.l.s8.bf16 %v138
    %v143 = vunpack.c.h.s8.bf16 %v138
    %v144 = vunpack.c.l.s8.bf16 %v139
    %v145 = vunpack.c.h.s8.bf16 %v139
    %v146 = vunpack.c.l.s8.bf16 %v140
    %v147 = vunpack.c.h.s8.bf16 %v140
    %v148 = vunpack.c.l.s8.bf16 %v141
    %v149 = vunpack.c.h.s8.bf16 %v141
    %v150 = vld [vmem:[#allocation2] sm:$0xff]
    %v151 = vld [vmem:[#allocation2 + $0x8] sm:$0xff]
    %v152 = vld [vmem:[#allocation2 + $0x10] sm:$0xff]
    %v153 = vld [vmem:[#allocation2 + $0x18] sm:$0xff]
    %v154 = vld [vmem:[#allocation2 + $0x20] sm:$0xff]
    %v155 = vld [vmem:[#allocation2 + $0x28] sm:$0xff]
    %v156 = vld [vmem:[#allocation2 + $0x30] sm:$0xff]
    %v157 = vld [vmem:[#allocation2 + $0x38] sm:$0xff]
    %v158 = vld [vmem:[#allocation2 + $0x40] sm:$0xff]
    %v159 = vld [vmem:[#allocation2 + $0x48] sm:$0xff]
    %v160 = vld [vmem:[#allocation2 + $0x50] sm:$0xff]
    %v161 = vld [vmem:[#allocation2 + $0x58] sm:$0xff]
    %v162 = vld [vmem:[#allocation2 + $0x60] sm:$0xff]
    %v163 = vld [vmem:[#allocation2 + $0x68] sm:$0xff]
    %v164 = vld [vmem:[#allocation2 + $0x70] sm:$0xff]
    %v165 = vld [vmem:[#allocation2 + $0x78] sm:$0xff]
    %v182 = vunpack.c.l.b16 %v122
    %v183 = vunpack.c.l.b16 %v123
    %v184 = vunpack.c.l.b16 %v124
    %v185 = vunpack.c.l.b16 %v125
    %v186 = vunpack.c.l.b16 %v126
    %v187 = vunpack.c.l.b16 %v127
    %v188 = vunpack.c.l.b16 %v128
    %v189 = vunpack.c.l.b16 %v129
    %v190 = vunpack.c.l.b16 %v130
    %v191 = vunpack.c.l.b16 %v131
    %v192 = vunpack.c.l.b16 %v132
    %v193 = vunpack.c.l.b16 %v133
    %v194 = vunpack.c.l.b16 %v134
    %v195 = vunpack.c.l.b16 %v135
    %v196 = vunpack.c.l.b16 %v136
    %v197 = vunpack.c.l.b16 %v137
    %v198 = vpack.c.b16 %v183, %v182
    %v199 = vpack.c.b16 %v185, %v184
    %v200 = vpack.c.b16 %v187, %v186
    %v201 = vpack.c.b16 %v189, %v188
    %v202 = vpack.c.b16 %v191, %v190
    %v203 = vpack.c.b16 %v193, %v192
    %v204 = vpack.c.b16 %v195, %v194
    %v205 = vpack.c.b16 %v197, %v196
    %214 = vmatprep.subr.bf16.mxu0 0
    %215 = vmatpush1.bf16.msra.mxu0 %v205
    %216 = vmatprep.subr.bf16.mxu0 0
    %217 = vmatpush1.bf16.msra.mxu0 %v204
    %218 = vmatprep.subr.bf16.mxu0 0
    %219 = vmatpush1.bf16.msra.mxu0 %v203
    %220 = vmatprep.subr.bf16.mxu0 0
    %221 = vmatpush1.bf16.msra.mxu0 %v202
    %222 = vmatprep.subr.bf16.mxu0 0
    %223 = vmatpush1.bf16.msra.mxu0 %v201
    %224 = vmatprep.subr.bf16.mxu0 0
    %225 = vmatpush1.bf16.msra.mxu0 %v200
    %226 = vmatprep.subr.bf16.mxu0 0
    %227 = vmatpush1.bf16.msra.mxu0 %v199
    %228 = vmatprep.subr.bf16.mxu0 0
    %229 = vmatpush1.bf16.msra.mxu0 %v198
    %230 = vmatprep.subr.bf16.mxu0 0
    %231 = vmatpush2.bf16.msra.mxu0 0
    %232 = vmatprep.subr.bf16.mxu0 0
    %233 = vmatpush2.bf16.msra.mxu0 0
    %234 = vmatprep.subr.bf16.mxu0 0
    %235 = vmatpush2.bf16.msra.mxu0 0
    %236 = vmatprep.subr.bf16.mxu0 0
    %237 = vmatpush2.bf16.msra.mxu0 0
    %238 = vmatprep.subr.bf16.mxu0 0
    %239 = vmatpush2.bf16.msra.mxu0 0
    %240 = vmatprep.subr.bf16.mxu0 0
    %241 = vmatpush2.bf16.msra.mxu0 0
    %242 = vmatprep.subr.bf16.mxu0 0
    %243 = vmatpush2.bf16.msra.mxu0 0
    %244 = vmatprep.subr.bf16.mxu0 0
    %245 = vmatpush2.bf16.msra.mxu0 0
    %246 = vmatprep.mubr.bf16.mxu0 0
    %247 = vmatmul.mubr.bf16.gmra.mxu0 %v142
    %v248 = vpop.f32.mrf.mxu0
    %v249 = vadd.f32 0.0, %v248
    %v250 = vpop.f32.mrf.mxu0
    %v251 = vpop.f32.mrf.mxu0
    %v252 = vadd.f32 0.0, %v251
    %v253 = vpop.f32.mrf.mxu0
    %254 = vmatprep.mubr.bf16.mxu0 0
    %255 = vmatmul.mubr.bf16.gmra.mxu0 %v143
    %v256 = vpop.f32.mrf.mxu0
    %v257 = vadd.f32 0.0, %v256
    %v258 = vpop.f32.mrf.mxu0
    %v259 = vpop.f32.mrf.mxu0
    %v260 = vadd.f32 0.0, %v259
    %v261 = vpop.f32.mrf.mxu0
    %262 = vmatprep.mubr.bf16.mxu0 0
    %263 = vmatmul.mubr.bf16.gmra.mxu0 %v144
    %v264 = vpop.f32.mrf.mxu0
    %v265 = vadd.f32 0.0, %v264
    %v266 = vpop.f32.mrf.mxu0
    %v267 = vpop.f32.mrf.mxu0
    %v268 = vadd.f32 0.0, %v267
    %v269 = vpop.f32.mrf.mxu0
    %270 = vmatprep.mubr.bf16.mxu0 0
    %271 = vmatmul.mubr.bf16.gmra.mxu0 %v145
    %v272 = vpop.f32.mrf.mxu0
    %v273 = vadd.f32 0.0, %v272
    %v274 = vpop.f32.mrf.mxu0
    %v275 = vpop.f32.mrf.mxu0
    %v276 = vadd.f32 0.0, %v275
    %v277 = vpop.f32.mrf.mxu0
    %278 = vmatprep.mubr.bf16.mxu0 0
    %279 = vmatmul.mubr.bf16.gmra.mxu0 %v146
    %v280 = vpop.f32.mrf.mxu0
    %v281 = vadd.f32 0.0, %v280
    %v282 = vpop.f32.mrf.mxu0
    %v283 = vpop.f32.mrf.mxu0
    %v284 = vadd.f32 0.0, %v283
    %v285 = vpop.f32.mrf.mxu0
    %286 = vmatprep.mubr.bf16.mxu0 0
    %287 = vmatmul.mubr.bf16.gmra.mxu0 %v147
    %v288 = vpop.f32.mrf.mxu0
    %v289 = vadd.f32 0.0, %v288
    %v290 = vpop.f32.mrf.mxu0
    %v291 = vpop.f32.mrf.mxu0
    %v292 = vadd.f32 0.0, %v291
    %v293 = vpop.f32.mrf.mxu0
    %294 = vmatprep.mubr.bf16.mxu0 0
    %295 = vmatmul.mubr.bf16.gmra.mxu0 %v148
    %v296 = vpop.f32.mrf.mxu0
    %v297 = vadd.f32 0.0, %v296
    %v298 = vpop.f32.mrf.mxu0
    %v299 = vpop.f32.mrf.mxu0
    %v300 = vadd.f32 0.0, %v299
    %v301 = vpop.f32.mrf.mxu0
    %302 = vmatprep.mubr.bf16.mxu0 0
    %303 = vmatmul.mubr.bf16.gmra.mxu0 %v149
    %v304 = vpop.f32.mrf.mxu0
    %v305 = vadd.f32 0.0, %v304
    %v306 = vpop.f32.mrf.mxu0
    %v307 = vpop.f32.mrf.mxu0
    %v308 = vadd.f32 0.0, %v307
    %v309 = vpop.f32.mrf.mxu0
    %310 = vdwg.mxu0
    %v311 = vadd.f32 %v150, %v249
    %v312 = vadd.f32 %v151, %v252
    %v313 = vadd.f32 %v152, %v257
    %v314 = vadd.f32 %v153, %v260
    %v315 = vadd.f32 %v154, %v265
    %v316 = vadd.f32 %v155, %v268
    %v317 = vadd.f32 %v156, %v273
    %v318 = vadd.f32 %v157, %v276
    %v319 = vadd.f32 %v158, %v281
    %v320 = vadd.f32 %v159, %v284
    %v321 = vadd.f32 %v160, %v289
    %v322 = vadd.f32 %v161, %v292
    %v323 = vadd.f32 %v162, %v297
    %v324 = vadd.f32 %v163, %v300
    %v325 = vadd.f32 %v164, %v305
    %v326 = vadd.f32 %v165, %v308
    %327 = vst [vmem:[#allocation2] sm:$0xff] %v311
    %328 = vst [vmem:[#allocation2 + $0x8] sm:$0xff] %v312
    %329 = vst [vmem:[#allocation2 + $0x10] sm:$0xff] %v313
    %330 = vst [vmem:[#allocation2 + $0x18] sm:$0xff] %v314
    %331 = vst [vmem:[#allocation2 + $0x20] sm:$0xff] %v315
    %332 = vst [vmem:[#allocation2 + $0x28] sm:$0xff] %v316
    %333 = vst [vmem:[#allocation2 + $0x30] sm:$0xff] %v317
    %334 = vst [vmem:[#allocation2 + $0x38] sm:$0xff] %v318
    %335 = vst [vmem:[#allocation2 + $0x40] sm:$0xff] %v319
    %336 = vst [vmem:[#allocation2 + $0x48] sm:$0xff] %v320
    %337 = vst [vmem:[#allocation2 + $0x50] sm:$0xff] %v321
    %338 = vst [vmem:[#allocation2 + $0x58] sm:$0xff] %v322
    %339 = vst [vmem:[#allocation2 + $0x60] sm:$0xff] %v323
    %340 = vst [vmem:[#allocation2 + $0x68] sm:$0xff] %v324
    %341 = vst [vmem:[#allocation2 + $0x70] sm:$0xff] %v325
    %342 = vst [vmem:[#allocation2 + $0x78] sm:$0xff] %v326
    // Predicated region
    $region34: #{tpu_custom_call.1} parent=1 // pred_check
      %p343 = pneg %p60
    $region35: #{tpu_custom_call.1} parent=1 // pred_check_branch
      %345 = sbr.rel (%p343) target = $region37
    $region36: #{tpu_custom_call.1} parent=1 // pred_region
      %v346 = vld [vmem:[#allocation2] sm:$0xff]
      %v347 = vld [vmem:[#allocation2 + $0x8] sm:$0xff]
      %v348 = vld [vmem:[#allocation2 + $0x10] sm:$0xff]
      %v349 = vld [vmem:[#allocation2 + $0x18] sm:$0xff]
      %v350 = vld [vmem:[#allocation2 + $0x20] sm:$0xff]
      %v351 = vld [vmem:[#allocation2 + $0x28] sm:$0xff]
      %v352 = vld [vmem:[#allocation2 + $0x30] sm:$0xff]
      %v353 = vld [vmem:[#allocation2 + $0x38] sm:$0xff]
      %v354 = vld [vmem:[#allocation2 + $0x40] sm:$0xff]
      %v355 = vld [vmem:[#allocation2 + $0x48] sm:$0xff]
      %v356 = vld [vmem:[#allocation2 + $0x50] sm:$0xff]
      %v357 = vld [vmem:[#allocation2 + $0x58] sm:$0xff]
      %v358 = vld [vmem:[#allocation2 + $0x60] sm:$0xff]
      %v359 = vld [vmem:[#allocation2 + $0x68] sm:$0xff]
      %v360 = vld [vmem:[#allocation2 + $0x70] sm:$0xff]
      %v361 = vld [vmem:[#allocation2 + $0x78] sm:$0xff]
      %v362 = vmax.f32 %v346, 1.0
      %v363 = vmax.f32 %v347, 1.0
      %v364 = vmax.f32 %v348, 1.0
      %v365 = vmax.f32 %v349, 1.0
      %v366 = vmax.f32 %v350, 1.0
      %v367 = vmax.f32 %v351, 1.0
      %v368 = vmax.f32 %v352, 1.0
      %v369 = vmax.f32 %v353, 1.0
      %v370 = vmax.f32 %v354, 1.0
      %v371 = vmax.f32 %v355, 1.0
      %v372 = vmax.f32 %v356, 1.0
      %v373 = vmax.f32 %v357, 1.0
      %v374 = vmax.f32 %v358, 1.0
      %v375 = vmax.f32 %v359, 1.0
      %v376 = vmax.f32 %v360, 1.0
      %v377 = vmax.f32 %v361, 1.0
      %379 = vset.pattern.permute.xlu0 32
      %380 = vperm.xlu0 %379, %v362
      %v381 = vpop.permute.xlu0 %380
      %384 = vset.pattern.permute.xlu0 32
      %385 = vperm.xlu0 %384, %v363
      %v386 = vpop.permute.xlu0 %385
      %389 = vset.pattern.permute.xlu0 32
      %390 = vperm.xlu0 %389, %v364
      %v391 = vpop.permute.xlu0 %390
      %394 = vset.pattern.permute.xlu0 32
      %395 = vperm.xlu0 %394, %v365
      %v396 = vpop.permute.xlu0 %395
      %399 = vset.pattern.permute.xlu0 32
      %400 = vperm.xlu0 %399, %v366
      %v401 = vpop.permute.xlu0 %400
      %404 = vset.pattern.permute.xlu0 32
      %405 = vperm.xlu0 %404, %v367
      %v406 = vpop.permute.xlu0 %405
      %409 = vset.pattern.permute.xlu0 32
      %410 = vperm.xlu0 %409, %v368
      %v411 = vpop.permute.xlu0 %410
      %414 = vset.pattern.permute.xlu0 32
      %415 = vperm.xlu0 %414, %v369
      %v416 = vpop.permute.xlu0 %415
      %419 = vset.pattern.permute.xlu0 32
      %420 = vperm.xlu0 %419, %v370
      %v421 = vpop.permute.xlu0 %420
      %424 = vset.pattern.permute.xlu0 32
      %425 = vperm.xlu0 %424, %v371
      %v426 = vpop.permute.xlu0 %425
      %429 = vset.pattern.permute.xlu0 32
      %430 = vperm.xlu0 %429, %v372
      %v431 = vpop.permute.xlu0 %430
      %434 = vset.pattern.permute.xlu0 32
      %435 = vperm.xlu0 %434, %v373
      %v436 = vpop.permute.xlu0 %435
      %439 = vset.pattern.permute.xlu0 32
      %440 = vperm.xlu0 %439, %v374
      %v441 = vpop.permute.xlu0 %440
      %444 = vset.pattern.permute.xlu0 32
      %445 = vperm.xlu0 %444, %v375
      %v446 = vpop.permute.xlu0 %445
      %449 = vset.pattern.permute.xlu0 32
      %450 = vperm.xlu0 %449, %v376
      %v451 = vpop.permute.xlu0 %450
      %454 = vset.pattern.permute.xlu0 32
      %455 = vperm.xlu0 %454, %v377
      %v456 = vpop.permute.xlu0 %455
      %v458 = vrcp.pop %v381
      %v459 = vmul.f32 %v346, %v458
      %v460 = vrcp.pop %v386
      %v461 = vmul.f32 %v347, %v460
      %v462 = vrcp.pop %v391
      %v463 = vmul.f32 %v348, %v462
      %v464 = vrcp.pop %v396
      %v465 = vmul.f32 %v349, %v464
      %v466 = vrcp.pop %v401
      %v467 = vmul.f32 %v350, %v466
      %v468 = vrcp.pop %v406
      %v469 = vmul.f32 %v351, %v468
      %v470 = vrcp.pop %v411
      %v471 = vmul.f32 %v352, %v470
      %v472 = vrcp.pop %v416
      %v473 = vmul.f32 %v353, %v472
      %v474 = vrcp.pop %v421
      %v475 = vmul.f32 %v354, %v474
      %v476 = vrcp.pop %v426
      %v477 = vmul.f32 %v355, %v476
      %v478 = vrcp.pop %v431
      %v479 = vmul.f32 %v356, %v478
      %v480 = vrcp.pop %v436
      %v481 = vmul.f32 %v357, %v480
      %v482 = vrcp.pop %v441
      %v483 = vmul.f32 %v358, %v482
      %v484 = vrcp.pop %v446
      %v485 = vmul.f32 %v359, %v484
      %v486 = vrcp.pop %v451
      %v487 = vmul.f32 %v360, %v486
      %v488 = vrcp.pop %v456
      %v489 = vmul.f32 %v361, %v488
      %v490 = vpack.c.bf16 %v461, %v459
      %v491 = vpack.c.bf16 %v465, %v463
      %v492 = vpack.c.bf16 %v469, %v467
      %v493 = vpack.c.bf16 %v473, %v471
      %v494 = vpack.c.bf16 %v477, %v475
      %v495 = vpack.c.bf16 %v481, %v479
      %v496 = vpack.c.bf16 %v485, %v483
      %v497 = vpack.c.bf16 %v489, %v487
      %v506 = vunpack.c.l.b16 %v490
      %v507 = vunpack.c.h.b16 %v490
      %v508 = vunpack.c.l.b16 %v491
      %v509 = vunpack.c.h.b16 %v491
      %v510 = vunpack.c.l.b16 %v492
      %v511 = vunpack.c.h.b16 %v492
      %v512 = vunpack.c.l.b16 %v493
      %v513 = vunpack.c.h.b16 %v493
      %v514 = vunpack.c.l.b16 %v494
      %v515 = vunpack.c.h.b16 %v494
      %v516 = vunpack.c.l.b16 %v495
      %v517 = vunpack.c.h.b16 %v495
      %v518 = vunpack.c.l.b16 %v496
      %v519 = vunpack.c.h.b16 %v496
      %v520 = vunpack.c.l.b16 %v497
      %v521 = vunpack.c.h.b16 %v497
      %v522 = vpack.c.b16 %v506, %v506
      %v523 = vpack.c.b16 %v507, %v507
      %v524 = vpack.c.b16 %v508, %v508
      %v525 = vpack.c.b16 %v509, %v509
      %v526 = vpack.c.b16 %v510, %v510
      %v527 = vpack.c.b16 %v511, %v511
      %v528 = vpack.c.b16 %v512, %v512
      %v529 = vpack.c.b16 %v513, %v513
      %v530 = vpack.c.b16 %v514, %v514
      %v531 = vpack.c.b16 %v515, %v515
      %v532 = vpack.c.b16 %v516, %v516
      %v533 = vpack.c.b16 %v517, %v517
      %v534 = vpack.c.b16 %v518, %v518
      %v535 = vpack.c.b16 %v519, %v519
      %v536 = vpack.c.b16 %v520, %v520
      %v537 = vpack.c.b16 %v521, %v521
      %554 = vst [vmem:[#allocation3 + $0x4] sm:$0xf] %v522
      %555 = vst [vmem:[#allocation3 + $0xc] sm:$0xf] %v523
      %556 = vst [vmem:[#allocation3 + $0x14] sm:$0xf] %v524
      %557 = vst [vmem:[#allocation3 + $0x1c] sm:$0xf] %v525
      %558 = vst [vmem:[#allocation3 + $0x24] sm:$0xf] %v526
      %559 = vst [vmem:[#allocation3 + $0x2c] sm:$0xf] %v527
      %560 = vst [vmem:[#allocation3 + $0x34] sm:$0xf] %v528
      %561 = vst [vmem:[#allocation3 + $0x3c] sm:$0xf] %v529
      %562 = vst [vmem:[#allocation3 + $0x44] sm:$0xf] %v530
      %563 = vst [vmem:[#allocation3 + $0x4c] sm:$0xf] %v531
      %564 = vst [vmem:[#allocation3 + $0x54] sm:$0xf] %v532
      %565 = vst [vmem:[#allocation3 + $0x5c] sm:$0xf] %v533
      %566 = vst [vmem:[#allocation3 + $0x64] sm:$0xf] %v534
      %567 = vst [vmem:[#allocation3 + $0x6c] sm:$0xf] %v535
      %568 = vst [vmem:[#allocation3 + $0x74] sm:$0xf] %v536
      %569 = vst [vmem:[#allocation3 + $0x7c] sm:$0xf] %v537
      %v570 = vld [vmem:[#allocation3] sm:$0xff]
      %v571 = vld [vmem:[#allocation3 + $0x8] sm:$0xff]
      %v572 = vld [vmem:[#allocation3 + $0x10] sm:$0xff]
      %v573 = vld [vmem:[#allocation3 + $0x18] sm:$0xff]
      %v574 = vld [vmem:[#allocation3 + $0x20] sm:$0xff]
      %v575 = vld [vmem:[#allocation3 + $0x28] sm:$0xff]
      %v576 = vld [vmem:[#allocation3 + $0x30] sm:$0xff]
      %v577 = vld [vmem:[#allocation3 + $0x38] sm:$0xff]
      %v578 = vld [vmem:[#allocation3 + $0x40] sm:$0xff]
      %v579 = vld [vmem:[#allocation3 + $0x48] sm:$0xff]
      %v580 = vld [vmem:[#allocation3 + $0x50] sm:$0xff]
      %v581 = vld [vmem:[#allocation3 + $0x58] sm:$0xff]
      %v582 = vld [vmem:[#allocation3 + $0x60] sm:$0xff]
      %v583 = vld [vmem:[#allocation3 + $0x68] sm:$0xff]
      %v584 = vld [vmem:[#allocation3 + $0x70] sm:$0xff]
      %v585 = vld [vmem:[#allocation3 + $0x78] sm:$0xff]
      %v586 = vld [vmem:[#allocation9] sm:$0xf]
      %v587 = vld [vmem:[#allocation9 + $0x4] sm:$0xf]
      %v588 = vld [vmem:[#allocation9 + $0x8] sm:$0xf]
      %v589 = vld [vmem:[#allocation9 + $0xc] sm:$0xf]
      %v590 = vld [vmem:[#allocation9 + $0x10] sm:$0xf]
      %v591 = vld [vmem:[#allocation9 + $0x14] sm:$0xf]
      %v592 = vld [vmem:[#allocation9 + $0x18] sm:$0xf]
      %v593 = vld [vmem:[#allocation9 + $0x1c] sm:$0xf]
      %v594 = vld [vmem:[#allocation9 + $0x20] sm:$0xf]
      %v595 = vld [vmem:[#allocation9 + $0x24] sm:$0xf]
      %v596 = vld [vmem:[#allocation9 + $0x28] sm:$0xf]
      %v597 = vld [vmem:[#allocation9 + $0x2c] sm:$0xf]
      %v598 = vld [vmem:[#allocation9 + $0x30] sm:$0xf]
      %v599 = vld [vmem:[#allocation9 + $0x34] sm:$0xf]
      %v600 = vld [vmem:[#allocation9 + $0x38] sm:$0xf]
      %v601 = vld [vmem:[#allocation9 + $0x3c] sm:$0xf]
      %v602 = vld [vmem:[#allocation9 + $0x40] sm:$0xf]
      %v603 = vld [vmem:[#allocation9 + $0x44] sm:$0xf]
      %v604 = vld [vmem:[#allocation9 + $0x48] sm:$0xf]
      %v605 = vld [vmem:[#allocation9 + $0x4c] sm:$0xf]
      %v606 = vld [vmem:[#allocation9 + $0x50] sm:$0xf]
      %v607 = vld [vmem:[#allocation9 + $0x54] sm:$0xf]
      %v608 = vld [vmem:[#allocation9 + $0x58] sm:$0xf]
      %v609 = vld [vmem:[#allocation9 + $0x5c] sm:$0xf]
      %v610 = vld [vmem:[#allocation9 + $0x60] sm:$0xf]
      %v611 = vld [vmem:[#allocation9 + $0x64] sm:$0xf]
      %v612 = vld [vmem:[#allocation9 + $0x68] sm:$0xf]
      %v613 = vld [vmem:[#allocation9 + $0x6c] sm:$0xf]
      %v614 = vld [vmem:[#allocation9 + $0x70] sm:$0xf]
      %v615 = vld [vmem:[#allocation9 + $0x74] sm:$0xf]
      %v616 = vld [vmem:[#allocation9 + $0x78] sm:$0xf]
      %v617 = vld [vmem:[#allocation9 + $0x7c] sm:$0xf]
      %v618 = vld [vmem:[%s3] sm:$0x1]
      %v620 = vlaneseq
      %v621 = vshrl.u32 %v620, 7
      %v622 = vsub.s32 0, %v621
      %v623 = vrot.slane %v618, %v622
      %v641 = vunpack.c.l.b16 %v570
      %v642 = vunpack.c.h.b16 %v570
      %v643 = vunpack.c.l.b16 %v571
      %v644 = vunpack.c.h.b16 %v571
      %v645 = vunpack.c.l.b16 %v572
      %v646 = vunpack.c.h.b16 %v572
      %v647 = vunpack.c.l.b16 %v573
      %v648 = vunpack.c.h.b16 %v573
      %v649 = vunpack.c.l.b16 %v574
      %v650 = vunpack.c.h.b16 %v574
      %v651 = vunpack.c.l.b16 %v575
      %v652 = vunpack.c.h.b16 %v575
      %v653 = vunpack.c.l.b16 %v576
      %v654 = vunpack.c.h.b16 %v576
      %v655 = vunpack.c.l.b16 %v577
      %v656 = vunpack.c.h.b16 %v577
      %v657 = vunpack.c.l.b16 %v578
      %v658 = vunpack.c.h.b16 %v578
      %v659 = vunpack.c.l.b16 %v579
      %v660 = vunpack.c.h.b16 %v579
      %v661 = vunpack.c.l.b16 %v580
      %v662 = vunpack.c.h.b16 %v580
      %v663 = vunpack.c.l.b16 %v581
      %v664 = vunpack.c.h.b16 %v581
      %v665 = vunpack.c.l.b16 %v582
      %v666 = vunpack.c.h.b16 %v582
      %v667 = vunpack.c.l.b16 %v583
      %v668 = vunpack.c.h.b16 %v583
      %v669 = vunpack.c.l.b16 %v584
      %v670 = vunpack.c.h.b16 %v584
      %v671 = vunpack.c.l.b16 %v585
      %v672 = vunpack.c.h.b16 %v585
      %v673 = vpack.c.b16 %v643, %v641
      %v674 = vpack.c.b16 %v644, %v642
      %v675 = vpack.c.b16 %v647, %v645
      %v676 = vpack.c.b16 %v648, %v646
      %v677 = vpack.c.b16 %v651, %v649
      %v678 = vpack.c.b16 %v652, %v650
      %v679 = vpack.c.b16 %v655, %v653
      %v680 = vpack.c.b16 %v656, %v654
      %v681 = vpack.c.b16 %v659, %v657
      %v682 = vpack.c.b16 %v660, %v658
      %v683 = vpack.c.b16 %v663, %v661
      %v684 = vpack.c.b16 %v664, %v662
      %v685 = vpack.c.b16 %v667, %v665
      %v686 = vpack.c.b16 %v668, %v666
      %v687 = vpack.c.b16 %v671, %v669
      %v688 = vpack.c.b16 %v672, %v670
      %v737 = vunpack.c.l.b16 %v586
      %v738 = vunpack.c.l.b16 %v587
      %v739 = vunpack.c.l.b16 %v588
      %v740 = vunpack.c.l.b16 %v589
      %v741 = vunpack.c.l.b16 %v590
      %v742 = vunpack.c.l.b16 %v591
      %v743 = vunpack.c.l.b16 %v592
      %v744 = vunpack.c.l.b16 %v593
      %v745 = vunpack.c.l.b16 %v594
      %v746 = vunpack.c.l.b16 %v595
      %v747 = vunpack.c.l.b16 %v596
      %v748 = vunpack.c.l.b16 %v597
      %v749 = vunpack.c.l.b16 %v598
      %v750 = vunpack.c.l.b16 %v599
      %v751 = vunpack.c.l.b16 %v600
      %v752 = vunpack.c.l.b16 %v601
      %v753 = vunpack.c.l.b16 %v602
      %v754 = vunpack.c.l.b16 %v603
      %v755 = vunpack.c.l.b16 %v604
      %v756 = vunpack.c.l.b16 %v605
      %v757 = vunpack.c.l.b16 %v606
      %v758 = vunpack.c.l.b16 %v607
      %v759 = vunpack.c.l.b16 %v608
      %v760 = vunpack.c.l.b16 %v609
      %v761 = vunpack.c.l.b16 %v610
      %v762 = vunpack.c.l.b16 %v611
      %v763 = vunpack.c.l.b16 %v612
      %v764 = vunpack.c.l.b16 %v613
      %v765 = vunpack.c.l.b16 %v614
      %v766 = vunpack.c.l.b16 %v615
      %v767 = vunpack.c.l.b16 %v616
      %v768 = vunpack.c.l.b16 %v617
      %v769 = vpack.c.b16 %v738, %v737
      %v770 = vpack.c.b16 %v740, %v739
      %v771 = vpack.c.b16 %v742, %v741
      %v772 = vpack.c.b16 %v744, %v743
      %v773 = vpack.c.b16 %v746, %v745
      %v774 = vpack.c.b16 %v748, %v747
      %v775 = vpack.c.b16 %v750, %v749
      %v776 = vpack.c.b16 %v752, %v751
      %v777 = vpack.c.b16 %v754, %v753
      %v778 = vpack.c.b16 %v756, %v755
      %v779 = vpack.c.b16 %v758, %v757
      %v780 = vpack.c.b16 %v760, %v759
      %v781 = vpack.c.b16 %v762, %v761
      %v782 = vpack.c.b16 %v764, %v763
      %v783 = vpack.c.b16 %v766, %v765
      %v784 = vpack.c.b16 %v768, %v767
      %801 = vmatprep.subr.bf16.mxu0 0
      %802 = vmatpush1.bf16.msra.mxu0 %v776
      %803 = vmatprep.subr.bf16.mxu0 0
      %804 = vmatpush1.bf16.msra.mxu0 %v775
      %805 = vmatprep.subr.bf16.mxu0 0
      %806 = vmatpush1.bf16.msra.mxu0 %v774
      %807 = vmatprep.subr.bf16.mxu0 0
      %808 = vmatpush1.bf16.msra.mxu0 %v773
      %809 = vmatprep.subr.bf16.mxu0 0
      %810 = vmatpush1.bf16.msra.mxu0 %v772
      %811 = vmatprep.subr.bf16.mxu0 0
      %812 = vmatpush1.bf16.msra.mxu0 %v771
      %813 = vmatprep.subr.bf16.mxu0 0
      %814 = vmatpush1.bf16.msra.mxu0 %v770
      %815 = vmatprep.subr.bf16.mxu0 0
      %816 = vmatpush1.bf16.msra.mxu0 %v769
      %817 = vmatprep.subr.bf16.mxu0 0
      %818 = vmatpush2.bf16.msra.mxu0 %v784
      %819 = vmatprep.subr.bf16.mxu0 0
      %820 = vmatpush2.bf16.msra.mxu0 %v783
      %821 = vmatprep.subr.bf16.mxu0 0
      %822 = vmatpush2.bf16.msra.mxu0 %v782
      %823 = vmatprep.subr.bf16.mxu0 0
      %824 = vmatpush2.bf16.msra.mxu0 %v781
      %825 = vmatprep.subr.bf16.mxu0 0
      %826 = vmatpush2.bf16.msra.mxu0 %v780
      %827 = vmatprep.subr.bf16.mxu0 0
      %828 = vmatpush2.bf16.msra.mxu0 %v779
      %829 = vmatprep.subr.bf16.mxu0 0
      %830 = vmatpush2.bf16.msra.mxu0 %v778
      %831 = vmatprep.subr.bf16.mxu0 0
      %832 = vmatpush2.bf16.msra.mxu0 %v777
      %833 = vmatprep.mubr.bf16.mxu0 %v674
      %834 = vmatmul.mubr.bf16.gmra.mxu0 %v673
      %v835 = vpop.f32.mrf.mxu0
      %v836 = vadd.f32 %v623, %v835
      %v837 = vpop.f32.mrf.mxu0
      %v838 = vpop.f32.mrf.mxu0
      %v839 = vadd.f32 %v623, %v838
      %v840 = vpop.f32.mrf.mxu0
      %841 = vmatprep.mubr.bf16.mxu0 %v676
      %842 = vmatmul.mubr.bf16.gmra.mxu0 %v675
      %v843 = vpop.f32.mrf.mxu0
      %v844 = vadd.f32 %v623, %v843
      %v845 = vpop.f32.mrf.mxu0
      %v846 = vpop.f32.mrf.mxu0
      %v847 = vadd.f32 %v623, %v846
      %v848 = vpop.f32.mrf.mxu0
      %849 = vmatprep.mubr.bf16.mxu0 %v678
      %850 = vmatmul.mubr.bf16.gmra.mxu0 %v677
      %v851 = vpop.f32.mrf.mxu0
      %v852 = vadd.f32 %v623, %v851
      %v853 = vpop.f32.mrf.mxu0
      %v854 = vpop.f32.mrf.mxu0
      %v855 = vadd.f32 %v623, %v854
      %v856 = vpop.f32.mrf.mxu0
      %857 = vmatprep.mubr.bf16.mxu0 %v680
      %858 = vmatmul.mubr.bf16.gmra.mxu0 %v679
      %v859 = vpop.f32.mrf.mxu0
      %v860 = vadd.f32 %v623, %v859
      %v861 = vpop.f32.mrf.mxu0
      %v862 = vpop.f32.mrf.mxu0
      %v863 = vadd.f32 %v623, %v862
      %v864 = vpop.f32.mrf.mxu0
      %865 = vmatprep.mubr.bf16.mxu0 %v682
      %866 = vmatmul.mubr.bf16.gmra.mxu0 %v681
      %v867 = vpop.f32.mrf.mxu0
      %v868 = vadd.f32 %v623, %v867
      %v869 = vpop.f32.mrf.mxu0
      %v870 = vpop.f32.mrf.mxu0
      %v871 = vadd.f32 %v623, %v870
      %v872 = vpop.f32.mrf.mxu0
      %873 = vmatprep.mubr.bf16.mxu0 %v684
      %874 = vmatmul.mubr.bf16.gmra.mxu0 %v683
      %v875 = vpop.f32.mrf.mxu0
      %v876 = vadd.f32 %v623, %v875
      %v877 = vpop.f32.mrf.mxu0
      %v878 = vpop.f32.mrf.mxu0
      %v879 = vadd.f32 %v623, %v878
      %v880 = vpop.f32.mrf.mxu0
      %881 = vmatprep.mubr.bf16.mxu0 %v686
      %882 = vmatmul.mubr.bf16.gmra.mxu0 %v685
      %v883 = vpop.f32.mrf.mxu0
      %v884 = vadd.f32 %v623, %v883
      %v885 = vpop.f32.mrf.mxu0
      %v886 = vpop.f32.mrf.mxu0
      %v887 = vadd.f32 %v623, %v886
      %v888 = vpop.f32.mrf.mxu0
      %889 = vmatprep.mubr.bf16.mxu0 %v688
      %890 = vmatmul.mubr.bf16.gmra.mxu0 %v687
      %v891 = vpop.f32.mrf.mxu0
      %v892 = vadd.f32 %v623, %v891
      %v893 = vpop.f32.mrf.mxu0
      %v894 = vpop.f32.mrf.mxu0
      %v895 = vadd.f32 %v623, %v894
      %v896 = vpop.f32.mrf.mxu0
      %897 = vdwg.mxu0
      %v898 = vmax.f32 %v836, 0.0
      %v899 = vmax.f32 %v839, 0.0
      %v900 = vmax.f32 %v844, 0.0
      %v901 = vmax.f32 %v847, 0.0
      %v902 = vmax.f32 %v852, 0.0
      %v903 = vmax.f32 %v855, 0.0
      %v904 = vmax.f32 %v860, 0.0
      %v905 = vmax.f32 %v863, 0.0
      %v906 = vmax.f32 %v868, 0.0
      %v907 = vmax.f32 %v871, 0.0
      %v908 = vmax.f32 %v876, 0.0
      %v909 = vmax.f32 %v879, 0.0
      %v910 = vmax.f32 %v884, 0.0
      %v911 = vmax.f32 %v887, 0.0
      %v912 = vmax.f32 %v892, 0.0
      %v913 = vmax.f32 %v895, 0.0
      %v914 = vpack.c.bf16 %v899, %v898
      %v915 = vpack.c.bf16 %v901, %v900
      %v916 = vpack.c.bf16 %v903, %v902
      %v917 = vpack.c.bf16 %v905, %v904
      %v918 = vpack.c.bf16 %v907, %v906
      %v919 = vpack.c.bf16 %v909, %v908
      %v920 = vpack.c.bf16 %v911, %v910
      %v921 = vpack.c.bf16 %v913, %v912
      %v930 = vunpack.c.l.b16 %v914
      %v931 = vunpack.c.h.b16 %v914
      %v932 = vunpack.c.l.b16 %v915
      %v933 = vunpack.c.h.b16 %v915
      %v934 = vunpack.c.l.b16 %v916
      %v935 = vunpack.c.h.b16 %v916
      %v936 = vunpack.c.l.b16 %v917
      %v937 = vunpack.c.h.b16 %v917
      %v938 = vunpack.c.l.b16 %v918
      %v939 = vunpack.c.h.b16 %v918
      %v940 = vunpack.c.l.b16 %v919
      %v941 = vunpack.c.h.b16 %v919
      %v942 = vunpack.c.l.b16 %v920
      %v943 = vunpack.c.h.b16 %v920
      %v944 = vunpack.c.l.b16 %v921
      %v945 = vunpack.c.h.b16 %v921
      %v946 = vpack.c.b16 %v930, %v930
      %v947 = vpack.c.b16 %v931, %v931
      %v948 = vpack.c.b16 %v932, %v932
      %v949 = vpack.c.b16 %v933, %v933
      %v950 = vpack.c.b16 %v934, %v934
      %v951 = vpack.c.b16 %v935, %v935
      %v952 = vpack.c.b16 %v936, %v936
      %v953 = vpack.c.b16 %v937, %v937
      %v954 = vpack.c.b16 %v938, %v938
      %v955 = vpack.c.b16 %v939, %v939
      %v956 = vpack.c.b16 %v940, %v940
      %v957 = vpack.c.b16 %v941, %v941
      %v958 = vpack.c.b16 %v942, %v942
      %v959 = vpack.c.b16 %v943, %v943
      %v960 = vpack.c.b16 %v944, %v944
      %v961 = vpack.c.b16 %v945, %v945
      %978 = vst [vmem:[#allocation10] sm:$0xf] %v946
      %979 = vst [vmem:[#allocation10 + $0x4] sm:$0xf] %v947
      %980 = vst [vmem:[#allocation10 + $0x8] sm:$0xf] %v948
      %981 = vst [vmem:[#allocation10 + $0xc] sm:$0xf] %v949
      %982 = vst [vmem:[#allocation10 + $0x10] sm:$0xf] %v950
      %983 = vst [vmem:[#allocation10 + $0x14] sm:$0xf] %v951
      %984 = vst [vmem:[#allocation10 + $0x18] sm:$0xf] %v952
      %985 = vst [vmem:[#allocation10 + $0x1c] sm:$0xf] %v953
      %986 = vst [vmem:[#allocation10 + $0x20] sm:$0xf] %v954
      %987 = vst [vmem:[#allocation10 + $0x24] sm:$0xf] %v955
      %988 = vst [vmem:[#allocation10 + $0x28] sm:$0xf] %v956
      %989 = vst [vmem:[#allocation10 + $0x2c] sm:$0xf] %v957
      %990 = vst [vmem:[#allocation10 + $0x30] sm:$0xf] %v958
      %991 = vst [vmem:[#allocation10 + $0x34] sm:$0xf] %v959
      %992 = vst [vmem:[#allocation10 + $0x38] sm:$0xf] %v960
      %993 = vst [vmem:[#allocation10 + $0x3c] sm:$0xf] %v961
    $region37: #{tpu_custom_call.1} parent=1 // pred_fallthru
      _
    // Predicated region
    $region38: #{tpu_custom_call.1} parent=1 // pred_check
      _
    $region39: #{tpu_custom_call.1} parent=1 // pred_check_branch
      %995 = sbr.rel (0) target = $region41
    $region40: #{tpu_custom_call.1} parent=1 // pred_region
      %s997 = ssub.s32 1024, 1024
      %998 = vsyncadd [#allocation6], %s997
      %s999 = sshll.u32 [#allocation10], 4
      %s1000 = int_to_ptr.vmem [resolvable:$true] %s999
      %1005 = dma.vmem_to_hbm [thread:$0]  %s1000, 1024, %s4, [#allocation6], 64, 64, 4
    $region41: #{tpu_custom_call.1} parent=1 // pred_fallthru
      _
    // Predicated region
    $region42: #{tpu_custom_call.1} parent=1 // pred_check
      _
    $region43: #{tpu_custom_call.1} parent=1 // pred_check_branch
      %1007 = sbr.rel (0) target = $region45
    $region44: #{tpu_custom_call.1} parent=1 // pred_region
      %1008 = dma.done [#allocation6], 1024
    $region45: #{tpu_custom_call.1} parent=1 // pred_fallthru
      _
    %1009 = vsyncpa [#allocation5], 1
    %1010 = vsyncpa [#allocation8], 1
    %1011 = vsyncpa [#allocation6], 1

</llo_original>
